<compile_context>
chip_gen: v6e
topology: v6e:2x2x1
jax: 0.10.0
libtpu: 0.0.40
codegen_flags: <defaults>
</compile_context>

<pallas_src>
import functools

import jax
import jax.numpy as jnp
from jax import lax
from jax.experimental import pallas as pl
from jax.experimental.pallas import tpu as pltpu


def _tiny_atten_kernel(x_ref, wqkv_ref, bqkv_ref, w2_ref, b2_ref, o_ref, *, d_attn):
    # x_ref block: (1, C_in, N) -- one batch element per grid step, channel-first.
    x = x_ref[0]                                                    # (C_in, N) f32

    # Fused QKV projection (the 1x1 conv1): (3D, C_in) @ (C_in, N) + (3D, 1).
    # The 1/sqrt(d_attn) score scale is pre-folded into the Q rows of wqkv / bqkv.
    qkv = jnp.dot(wqkv_ref[...], x,
                  preferred_element_type=jnp.float32) + bqkv_ref[...]   # (3D, N)
    q_t = qkv[0 * d_attn:1 * d_attn]                                # (D, N), pre-scaled
    k_t = qkv[1 * d_attn:2 * d_attn]                                # (D, N)
    v_t = qkv[2 * d_attn:3 * d_attn]                                # (D, N)

    # Scores s[n, m] = sum_d q[d, n] * k[d, m].  One small explicit transpose of q
    # puts the contraction in the MXU-native (N, D) @ (D, N) orientation; operands
    # are bf16, accumulation stays f32.
    q_nd = q_t.T.astype(jnp.bfloat16)                               # (N, D)
    s = jnp.dot(q_nd, k_t.astype(jnp.bfloat16),
                preferred_element_type=jnp.float32)                 # (N, N)

    # Numerically-stable softmax over the key axis; EUP approx reciprocal.
    s = s - jnp.max(s, axis=-1, keepdims=True)
    e = jnp.exp(s)
    a = e * pl.reciprocal(jnp.sum(e, axis=-1, keepdims=True), approx=True)

    # Attention output, channel-first: attn[d, n] = sum_m v[d, m] * a[n, m].
    # Contract the key axis of both operands (trans_b) -- no transposed (N,N) copy.
    attn_t = lax.dot_general(v_t.astype(jnp.bfloat16), a.astype(jnp.bfloat16),
                             (((1,), (1,)), ((), ())),
                             preferred_element_type=jnp.float32)    # (D, N)

    # conv2 (1x1): (C_out, D) @ (D, N) + (C_out, 1)  ->  lane-dense (C_out, N) store.
    out = jnp.dot(w2_ref[...], attn_t,
                  preferred_element_type=jnp.float32) + b2_ref[...]
    o_ref[0] = out.astype(o_ref.dtype)


def tiny_atten(x, params, *, d_attn):
    """x: (B, C_in, N) float32 (PyTorch NCW layout).  Returns (B, C_out, N)."""
    wq, wk, wv, bq, bk, bv, w2, b2 = params
    B, C_in, N = x.shape
    C_out = w2.shape[0]

    # Trace-time parameter prep (runs once under jit, not per grid step):
    # fuse QKV, fold the 1/sqrt(d_attn) score scale into the Q rows, and shape the
    # biases as column vectors for channel-first broadcasting inside the kernel.
    scale = jnp.float32(d_attn) ** jnp.float32(-0.5)
    wqkv = jnp.concatenate([wq * scale, wk, wv], axis=0)            # (3D, C_in)
    bqkv = jnp.concatenate([bq * scale, bk, bv], axis=0)[:, None]   # (3D, 1)
    b2c = b2[:, None]                                               # (C_out, 1)

    full = lambda b: (0, 0)

    return pl.pallas_call(
        functools.partial(_tiny_atten_kernel, d_attn=d_attn),
        out_shape=jax.ShapeDtypeStruct((B, C_out, N), x.dtype),
        grid=(B,),
        in_specs=[
            pl.BlockSpec((1, C_in, N), lambda b: (b, 0, 0)),        # x (per-batch tile)
            pl.BlockSpec((3 * d_attn, C_in), full),                 # fused Wqkv
            pl.BlockSpec((3 * d_attn, 1), full),                    # fused bqkv
            pl.BlockSpec((C_out, d_attn), full),                    # W2
            pl.BlockSpec((C_out, 1), full),                         # b2
        ],
        out_specs=pl.BlockSpec((1, C_out, N), lambda b: (b, 0, 0)),
        compiler_params=pltpu.CompilerParams(
            dimension_semantics=("parallel",)),
    )(x, wqkv, bqkv, w2, b2c)


def init_params(key, in_channels, out_channels, d_attn):
    """Deterministic synthetic parameters.
    PyTorch shapes: conv1.weight (3*d_attn, in_channels, 1), conv1.bias (3*d_attn,)
                    conv2.weight (out_channels, d_attn, 1),  conv2.bias (out_channels,)
    We drop the trailing kernel-size-1 dim and split conv1 into Q/K/V chunks."""
    k1, k2, k3, k4 = jax.random.split(key, 4)
    w1 = jax.random.normal(k1, (3 * d_attn, in_channels), jnp.float32) * 0.1
    b1 = jax.random.normal(k2, (3 * d_attn,), jnp.float32) * 0.1
    w2 = jax.random.normal(k3, (out_channels, d_attn), jnp.float32) * 0.1
    b2 = jax.random.normal(k4, (out_channels,), jnp.float32) * 0.1
    wq, wk, wv = w1[:d_attn], w1[d_attn:2 * d_attn], w1[2 * d_attn:]
    bq, bk, bv = b1[:d_attn], b1[d_attn:2 * d_attn], b1[2 * d_attn:]
    return (wq, wk, wv, bq, bk, bv, w2, b2)


def tiny_atten_reference(x, params, *, d_attn, matmul_dtype=jnp.float32):
    """Pure-JAX reference mirroring the PyTorch forward.  matmul_dtype=bfloat16
    additionally emulates the kernel's bf16 score/attention matmuls (f32 accum)."""
    wq, wk, wv, bq, bk, bv, w2, b2 = params
    x_t = jnp.transpose(x, (0, 2, 1))                               # (B, N, C_in)
    q = x_t @ wq.T + bq
    k = x_t @ wk.T + bk
    v = x_t @ wv.T + bv
    scale = d_attn ** -0.5
    w = jnp.einsum('bnd,bmd->bnm',
                   (q * scale).astype(matmul_dtype), k.astype(matmul_dtype),
                   preferred_element_type=jnp.float32)
    a = jax.nn.softmax(w, axis=-1)
    o = jnp.einsum('bnm,bmd->bnd',
                   a.astype(matmul_dtype), v.astype(matmul_dtype),
                   preferred_element_type=jnp.float32)
    out = o @ w2.T + b2
    return jnp.transpose(out, (0, 2, 1))


if __name__ == "__main__":
    B, C_in, N = 2, 16, 128
    D_ATTN, C_OUT = 64, 32

    key = jax.random.PRNGKey(0)
    kx, kp = jax.random.split(key)
    x = jax.random.normal(kx, (B, C_in, N), jnp.float32)
    params = init_params(kp, C_in, C_OUT, D_ATTN)

    out = tiny_atten(x, params, d_attn=D_ATTN)
    jax.block_until_ready(out)
    assert out.shape == (B, C_OUT, N), out.shape

    # Structural check against a reference that uses the same bf16 MXU matmuls
    # (tight tolerance; remaining delta = approx EUP reciprocal + accum order).
    ref_bf16 = tiny_atten_reference(x, params, d_attn=D_ATTN,
                                    matmul_dtype=jnp.bfloat16)
    assert jnp.allclose(out, ref_bf16, atol=5e-3, rtol=5e-3), \
        float(jnp.max(jnp.abs(out - ref_bf16)))

    # Semantics check against the pure-f32 PyTorch-equivalent forward (looser
    # tolerance covers the deliberate bf16 score/attention matmuls).
    ref_f32 = tiny_atten_reference(x, params, d_attn=D_ATTN,
                                   matmul_dtype=jnp.float32)
    assert jnp.allclose(out, ref_f32, atol=3e-2, rtol=3e-2), \
        float(jnp.max(jnp.abs(out - ref_f32)))

    print("KERNEL_OK")
</pallas_src>

<mosaic_0001>
module attributes {stable_mosaic.version = 11 : i64} {
  func.func @_tiny_atten_kernel(%arg0: i32, %arg1: memref<1x16x128xf32, #tpu.memory_space<vmem>>, %arg2: memref<192x16xf32, #tpu.memory_space<vmem>>, %arg3: memref<192x1xf32, #tpu.memory_space<vmem>>, %arg4: memref<32x64xf32, #tpu.memory_space<vmem>>, %arg5: memref<32x1xf32, #tpu.memory_space<vmem>>, %arg6: memref<1x32x128xf32, #tpu.memory_space<vmem>>) attributes {dimension_semantics = [#tpu.dimension_semantics<parallel>], iteration_bounds = array<i64: 2>, scalar_prefetch = 0 : i64, scratch_operands = 0 : i64, tpu.core_type = #tpu.core_type<tc>, window_params = [{transform_indices = @transform_0, window_bounds = array<i64: 1, 16, 128>}, {pipeline_mode = #tpu.pipeline_mode<synchronous>, transform_indices = @transform_1, window_bounds = array<i64: 192, 16>}, {pipeline_mode = #tpu.pipeline_mode<synchronous>, transform_indices = @transform_2, window_bounds = array<i64: 192, 1>}, {pipeline_mode = #tpu.pipeline_mode<synchronous>, transform_indices = @transform_3, window_bounds = array<i64: 32, 64>}, {pipeline_mode = #tpu.pipeline_mode<synchronous>, transform_indices = @transform_4, window_bounds = array<i64: 32, 1>}, {transform_indices = @transform_5, window_bounds = array<i64: 1, 32, 128>}]} {
    %c0 = arith.constant 0 : index
    %c0_0 = arith.constant 0 : index
    %c0_1 = arith.constant 0 : index
    %0 = vector.load %arg1[%c0, %c0_0, %c0_1] : memref<1x16x128xf32, #tpu.memory_space<vmem>>, vector<1x16x128xf32>
    %1 = vector.shape_cast %0 : vector<1x16x128xf32> to vector<16x128xf32>
    %c0_2 = arith.constant 0 : index
    %c0_3 = arith.constant 0 : index
    %2 = vector.load %arg2[%c0_2, %c0_3] : memref<192x16xf32, #tpu.memory_space<vmem>>, vector<192x16xf32>
    %cst = arith.constant dense<0.000000e+00> : vector<192x128xf32>
    %3 = tpu.matmul %2, %1, %cst {dimension_numbers = #tpu.dot_dimension_numbers<[1], [0], [0], [1], [0, 0, 1, 1], [], []>} : vector<192x16xf32>, vector<16x128xf32>, vector<192x128xf32> -> vector<192x128xf32>
    %c0_4 = arith.constant 0 : index
    %c0_5 = arith.constant 0 : index
    %4 = vector.load %arg3[%c0_4, %c0_5] : memref<192x1xf32, #tpu.memory_space<vmem>>, vector<192x1xf32>
    %5 = vector.broadcast %4 : vector<192x1xf32> to vector<192x128xf32>
    %6 = arith.addf %3, %5 : vector<192x128xf32>
    %7 = vector.extract_strided_slice %6 {offsets = [0, 0], sizes = [64, 128], strides = [1, 1]} : vector<192x128xf32> to vector<64x128xf32>
    %8 = vector.extract_strided_slice %6 {offsets = [64, 0], sizes = [64, 128], strides = [1, 1]} : vector<192x128xf32> to vector<64x128xf32>
    %9 = vector.extract_strided_slice %6 {offsets = [128, 0], sizes = [64, 128], strides = [1, 1]} : vector<192x128xf32> to vector<64x128xf32>
    %10 = tpu.transpose %7, [1, 0] : vector<64x128xf32> -> vector<128x64xf32>
    %11 = arith.truncf %10 : vector<128x64xf32> to vector<128x64xbf16>
    %12 = arith.truncf %8 : vector<64x128xf32> to vector<64x128xbf16>
    %cst_6 = arith.constant dense<0.000000e+00> : vector<128x128xf32>
    %13 = tpu.matmul %11, %12, %cst_6 {dimension_numbers = #tpu.dot_dimension_numbers<[1], [0], [0], [1], [0, 0, 1, 1], [], []>} : vector<128x64xbf16>, vector<64x128xbf16>, vector<128x128xf32> -> vector<128x128xf32>
    %cst_7 = arith.constant dense<0xFF800000> : vector<128xf32>
    %14 = vector.multi_reduction <maximumf>, %13, %cst_7 [1] : vector<128x128xf32> to vector<128xf32>
    %15 = vector.shape_cast %14 : vector<128xf32> to vector<128x1xf32>
    %16 = vector.broadcast %15 : vector<128x1xf32> to vector<128x128xf32>
    %17 = arith.subf %13, %16 : vector<128x128xf32>
    %18 = math.exp %17 : vector<128x128xf32>
    %cst_8 = arith.constant dense<0.000000e+00> : vector<128xf32>
    %19 = vector.multi_reduction <add>, %18, %cst_8 [1] : vector<128x128xf32> to vector<128xf32>
    %20 = vector.shape_cast %19 : vector<128xf32> to vector<128x1xf32>
    %21 = tpu.reciprocal %20 {approx = true} : vector<128x1xf32> -> vector<128x1xf32>
    %22 = vector.broadcast %21 : vector<128x1xf32> to vector<128x128xf32>
    %23 = arith.mulf %18, %22 : vector<128x128xf32>
    %24 = arith.truncf %9 : vector<64x128xf32> to vector<64x128xbf16>
    %25 = arith.truncf %23 : vector<128x128xf32> to vector<128x128xbf16>
    %cst_9 = arith.constant dense<0.000000e+00> : vector<64x128xf32>
    %26 = tpu.matmul %24, %25, %cst_9 {dimension_numbers = #tpu.dot_dimension_numbers<[1], [1], [0], [0], [0, 0, 1, 0], [], []>} : vector<64x128xbf16>, vector<128x128xbf16>, vector<64x128xf32> -> vector<64x128xf32>
    %c0_10 = arith.constant 0 : index
    %c0_11 = arith.constant 0 : index
    %27 = vector.load %arg4[%c0_10, %c0_11] : memref<32x64xf32, #tpu.memory_space<vmem>>, vector<32x64xf32>
    %cst_12 = arith.constant dense<0.000000e+00> : vector<32x128xf32>
    %28 = tpu.matmul %27, %26, %cst_12 {dimension_numbers = #tpu.dot_dimension_numbers<[1], [0], [0], [1], [0, 0, 1, 1], [], []>} : vector<32x64xf32>, vector<64x128xf32>, vector<32x128xf32> -> vector<32x128xf32>
    %c0_13 = arith.constant 0 : index
    %c0_14 = arith.constant 0 : index
    %29 = vector.load %arg5[%c0_13, %c0_14] : memref<32x1xf32, #tpu.memory_space<vmem>>, vector<32x1xf32>
    %30 = vector.broadcast %29 : vector<32x1xf32> to vector<32x128xf32>
    %31 = arith.addf %28, %30 : vector<32x128xf32>
    %c0_15 = arith.constant 0 : index
    %c0_16 = arith.constant 0 : index
    %c0_17 = arith.constant 0 : index
    %32 = vector.load %arg6[%c0_15, %c0_16, %c0_17] : memref<1x32x128xf32, #tpu.memory_space<vmem>>, vector<1x32x128xf32>
    %33 = vector.shape_cast %32 : vector<1x32x128xf32> to vector<32x128xf32>
    %34 = vector.shape_cast %31 : vector<32x128xf32> to vector<1x32x128xf32>
    tpu.vector_store %arg6[%c0_15, %c0_16, %c0_17], %34 {strides = array<i32>} : memref<1x32x128xf32, #tpu.memory_space<vmem>>, vector<1x32x128xf32>,
    return
  }
  func.func @transform_0(%arg0: i32) -> (i32, i32, i32) {
    %c0_i32 = arith.constant 0 : i32
    %c0_i32_0 = arith.constant 0 : i32
    %c0_i32_1 = arith.constant 0 : i32
    return %arg0, %c0_i32, %c0_i32_0 : i32, i32, i32
  }
  func.func @transform_1(%arg0: i32) -> (i32, i32) {
    %c0_i32 = arith.constant 0 : i32
    %c0_i32_0 = arith.constant 0 : i32
    %c0_i32_1 = arith.constant 0 : i32
    return %c0_i32, %c0_i32_0 : i32, i32
  }
  func.func @transform_2(%arg0: i32) -> (i32, i32) {
    %c0_i32 = arith.constant 0 : i32
    %c0_i32_0 = arith.constant 0 : i32
    %c0_i32_1 = arith.constant 0 : i32
    return %c0_i32, %c0_i32_0 : i32, i32
  }
  func.func @transform_3(%arg0: i32) -> (i32, i32) {
    %c0_i32 = arith.constant 0 : i32
    %c0_i32_0 = arith.constant 0 : i32
    %c0_i32_1 = arith.constant 0 : i32
    return %c0_i32, %c0_i32_0 : i32, i32
  }
  func.func @transform_4(%arg0: i32) -> (i32, i32) {
    %c0_i32 = arith.constant 0 : i32
    %c0_i32_0 = arith.constant 0 : i32
    %c0_i32_1 = arith.constant 0 : i32
    return %c0_i32, %c0_i32_0 : i32, i32
  }
  func.func @transform_5(%arg0: i32) -> (i32, i32, i32) {
    %c0_i32 = arith.constant 0 : i32
    %c0_i32_0 = arith.constant 0 : i32
    %c0_i32_1 = arith.constant 0 : i32
    return %arg0, %c0_i32, %c0_i32_0 : i32, i32, i32
  }
}

</mosaic_0001>

<llo_original>
// kernel: tpu_custom_call.1
$region0: #{tpu_custom_call.1}
  #allocation0 [shape = 'u32[]', space=smem, size = 0x4, offset = 0x4, fixed_abs, tag = 'smem constant byte address 0x4 - core index']
  #allocation1 [shape = 'u32[144,128]{1,0:T(1,128)}', space=vmem, size = 0x12000, scoped, tag = 'internal scratch']
  %s0 = inlined_call_operand.vmem [shape: f32[2,16,128], index: 0, kind: input, shape index: {}]
  %s1 = inlined_call_operand.vmem [shape: f32[192,16], index: 1, kind: input, shape index: {}]
  %s2 = inlined_call_operand.vmem [shape: f32[192,1], index: 2, kind: input, shape index: {}]
  %s3 = inlined_call_operand.vmem [shape: f32[32,64], index: 3, kind: input, shape index: {}]
  %s4 = inlined_call_operand.vmem [shape: f32[32,1], index: 4, kind: input, shape index: {}]
  %s5 = inlined_call_operand.hbm [shape: f32[2,32,128], index: 5, kind: output, shape index: {}]
  %s6 = sld [smem:[#allocation0]]
  $region53: #{tpu_custom_call.1} parent=0
    _
  %s8 = ssub.s32 1, %s6
  %s9 = scalar_select 0, %s8, %s6
  $region1: #{tpu_custom_call.1} parent=0
    #allocation2 [shape = 'u8[32768]{0}', space=vmem, size = 0x8000, scoped, tag = 'output window, operand 0']
    #allocation3 [shape = 's32[2]{0}', space=sflag, size = 0x8, scoped, tag = 'scoped memory for tpu_custom_call.1']
    %10 = vsyncpa [#allocation3], 0
    %s11 = scalar_lea.sflag [#allocation3], 1
    %12 = vsyncpa %s11, 0
    loop: start=0, step=1, limit=4
    $region2: #{tpu_custom_call.1} parent=1 // loop_pre_header
      _
    $region3: #{tpu_custom_call.1} parent=1 // loop_header
      %s14 = sphi 0, %s18
      %p15 = scmp.ge.s32.totalorder %s14, 4
      %s24 = sphi 0, %s26
      %s27 = sphi 0, %s24
      %s28 = sphi 0, %s27
      %s44 = sphi 0, %s28
      %s48 = sphi 0, %s48
      %s50 = sphi 0, %s48
      %s51 = sphi 0, %s50
      %s65 = sphi 0, %s51
      %s69 = sphi 0, %s69
      %s71 = sphi 0, %s69
      %s72 = sphi 0, %s71
      %s86 = sphi 0, %s72
      %s90 = sphi 0, %s90
      %s92 = sphi 0, %s90
      %s93 = sphi 0, %s92
      %s107 = sphi 0, %s93
      %s111 = sphi 0, %s111
      %s113 = sphi 0, %s111
      %s114 = sphi 0, %s113
      %s128 = sphi 0, %s114
      %s134 = sphi 0, %s136
      %s137 = sphi 0, %s134
      %s138 = sphi 0, %s137
      %s154 = sphi 0, %s138
    $region4: #{tpu_custom_call.1} parent=1 // loop_header_branch
      %17 = sbr.rel (%p15) target = $region8
    $region5: #{tpu_custom_call.1} parent=1 // loop_body
      %s19 = ssub.s32 %s14, 1
      %s20 = ssub.s32 %s14, 2
      %s21 = sadd.s32 %s14, 1
      %s22 = ssub.s32 %s14, %s21
      %p23 = scmp.eq.s32.totalorder %s22, 0
      %s25 = sadd.s32 %s24, 1
      %s26 = scalar_select %p23, %s24, %s25
      %p29 = pneg %p23
      %p30 = scmp.eq.s32.totalorder %s14, 1
      %p31 = por %p29, %p30
      %p32 = scmp.ne.s32.totalorder %s24, %s27
      %p33 = scmp.eq.s32.totalorder %s14, 0
      %p34 = por %p32, %p33
      %p35 = scmp.ne.s32.totalorder %s24, %s27
      %p36 = scmp.eq.s32.totalorder %s19, 1
      %p37 = por %p35, %p36
      %p38 = scmp.ne.s32.totalorder %s27, %s28
      %p39 = scmp.eq.s32.totalorder %s19, 0
      %p40 = por %p38, %p39
      %p41 = scmp.ne.s32.totalorder %s27, %s28
      %p42 = scmp.eq.s32.totalorder %s20, 1
      %p43 = por %p41, %p42
      %p45 = scmp.ne.s32.totalorder %s28, %s44
      %p46 = scmp.eq.s32.totalorder %s20, 0
      %p47 = por %p45, %p46
      %s49 = sadd.s32 %s48, 1
      %p52 = scmp.eq.s32.totalorder %s14, 1
      %p53 = scmp.ne.s32.totalorder %s48, %s50
      %p54 = scmp.eq.s32.totalorder %s14, 0
      %p55 = por %p53, %p54
      %p56 = scmp.ne.s32.totalorder %s48, %s50
      %p57 = scmp.eq.s32.totalorder %s19, 1
      %p58 = por %p56, %p57
      %p59 = scmp.ne.s32.totalorder %s50, %s51
      %p60 = scmp.eq.s32.totalorder %s19, 0
      %p61 = por %p59, %p60
      %p62 = scmp.ne.s32.totalorder %s50, %s51
      %p63 = scmp.eq.s32.totalorder %s20, 1
      %p64 = por %p62, %p63
      %p66 = scmp.ne.s32.totalorder %s51, %s65
      %p67 = scmp.eq.s32.totalorder %s20, 0
      %p68 = por %p66, %p67
      %s70 = sadd.s32 %s69, 1
      %p73 = scmp.eq.s32.totalorder %s14, 1
      %p74 = scmp.ne.s32.totalorder %s69, %s71
      %p75 = scmp.eq.s32.totalorder %s14, 0
      %p76 = por %p74, %p75
      %p77 = scmp.ne.s32.totalorder %s69, %s71
      %p78 = scmp.eq.s32.totalorder %s19, 1
      %p79 = por %p77, %p78
      %p80 = scmp.ne.s32.totalorder %s71, %s72
      %p81 = scmp.eq.s32.totalorder %s19, 0
      %p82 = por %p80, %p81
      %p83 = scmp.ne.s32.totalorder %s71, %s72
      %p84 = scmp.eq.s32.totalorder %s20, 1
      %p85 = por %p83, %p84
      %p87 = scmp.ne.s32.totalorder %s72, %s86
      %p88 = scmp.eq.s32.totalorder %s20, 0
      %p89 = por %p87, %p88
      %s91 = sadd.s32 %s90, 1
      %p94 = scmp.eq.s32.totalorder %s14, 1
      %p95 = scmp.ne.s32.totalorder %s90, %s92
      %p96 = scmp.eq.s32.totalorder %s14, 0
      %p97 = por %p95, %p96
      %p98 = scmp.ne.s32.totalorder %s90, %s92
      %p99 = scmp.eq.s32.totalorder %s19, 1
      %p100 = por %p98, %p99
      %p101 = scmp.ne.s32.totalorder %s92, %s93
      %p102 = scmp.eq.s32.totalorder %s19, 0
      %p103 = por %p101, %p102
      %p104 = scmp.ne.s32.totalorder %s92, %s93
      %p105 = scmp.eq.s32.totalorder %s20, 1
      %p106 = por %p104, %p105
      %p108 = scmp.ne.s32.totalorder %s93, %s107
      %p109 = scmp.eq.s32.totalorder %s20, 0
      %p110 = por %p108, %p109
      %s112 = sadd.s32 %s111, 1
      %p115 = scmp.eq.s32.totalorder %s14, 1
      %p116 = scmp.ne.s32.totalorder %s111, %s113
      %p117 = scmp.eq.s32.totalorder %s14, 0
      %p118 = por %p116, %p117
      %p119 = scmp.ne.s32.totalorder %s111, %s113
      %p120 = scmp.eq.s32.totalorder %s19, 1
      %p121 = por %p119, %p120
      %p122 = scmp.ne.s32.totalorder %s113, %s114
      %p123 = scmp.eq.s32.totalorder %s19, 0
      %p124 = por %p122, %p123
      %p125 = scmp.ne.s32.totalorder %s113, %s114
      %p126 = scmp.eq.s32.totalorder %s20, 1
      %p127 = por %p125, %p126
      %p129 = scmp.ne.s32.totalorder %s114, %s128
      %p130 = scmp.eq.s32.totalorder %s20, 0
      %p131 = por %p129, %p130
      %s132 = ssub.s32 %s14, %s21
      %p133 = scmp.eq.s32.totalorder %s132, 0
      %s135 = sadd.s32 %s134, 1
      %s136 = scalar_select %p133, %s134, %s135
      %p139 = pneg %p133
      %p140 = scmp.eq.s32.totalorder %s14, 1
      %p141 = por %p139, %p140
      %p142 = scmp.ne.s32.totalorder %s134, %s137
      %p143 = scmp.eq.s32.totalorder %s14, 0
      %p144 = por %p142, %p143
      %p145 = scmp.ne.s32.totalorder %s134, %s137
      %p146 = scmp.eq.s32.totalorder %s19, 1
      %p147 = por %p145, %p146
      %p148 = scmp.ne.s32.totalorder %s137, %s138
      %p149 = scmp.eq.s32.totalorder %s19, 0
      %p150 = por %p148, %p149
      %p151 = scmp.ne.s32.totalorder %s137, %s138
      %p152 = scmp.eq.s32.totalorder %s20, 1
      %p153 = por %p151, %p152
      %p155 = scmp.ne.s32.totalorder %s138, %s154
      %p156 = scmp.eq.s32.totalorder %s20, 0
      %p157 = por %p155, %p156
      %p158 = scmp.le.s32.totalorder 1, %s14
      %p159 = scmp.lt.s32.totalorder %s14, 3
      %p160 = pnand %p158, %p159
      %p161 = pneg %p160
      // Predicated region
      $region9: #{tpu_custom_call.1} parent=5 // pred_check
        _
      $region10: #{tpu_custom_call.1} parent=5 // pred_check_branch
        %163 = sbr.rel (%p160) target = $region12
      $region11: #{tpu_custom_call.1} parent=5 // pred_region
        %s164 = ssub.s32 %s14, 1
        // Predicated region
        $region13: #{tpu_custom_call.1} parent=11 // pred_check
          %p165 = pneg %p61
        $region14: #{tpu_custom_call.1} parent=11 // pred_check_branch
          %167 = sbr.rel (%p165) target = $region16
        $region15: #{tpu_custom_call.1} parent=11 // pred_region
          _
        $region16: #{tpu_custom_call.1} parent=11 // pred_fallthru
          _
        // Predicated region
        $region17: #{tpu_custom_call.1} parent=11 // pred_check
          %p168 = pneg %p82
        $region18: #{tpu_custom_call.1} parent=11 // pred_check_branch
          %170 = sbr.rel (%p168) target = $region20
        $region19: #{tpu_custom_call.1} parent=11 // pred_region
          _
        $region20: #{tpu_custom_call.1} parent=11 // pred_fallthru
          _
        // Predicated region
        $region21: #{tpu_custom_call.1} parent=11 // pred_check
          %p171 = pneg %p103
        $region22: #{tpu_custom_call.1} parent=11 // pred_check_branch
          %173 = sbr.rel (%p171) target = $region24
        $region23: #{tpu_custom_call.1} parent=11 // pred_region
          _
        $region24: #{tpu_custom_call.1} parent=11 // pred_fallthru
          _
        // Predicated region
        $region25: #{tpu_custom_call.1} parent=11 // pred_check
          %p174 = pneg %p124
        $region26: #{tpu_custom_call.1} parent=11 // pred_check_branch
          %176 = sbr.rel (%p174) target = $region28
        $region27: #{tpu_custom_call.1} parent=11 // pred_region
          _
        $region28: #{tpu_custom_call.1} parent=11 // pred_fallthru
          _
      $region12: #{tpu_custom_call.1} parent=5 // pred_fallthru
        _
      %p177 = scmp.lt.s32.totalorder %s14, 2
      // Predicated region
      $region29: #{tpu_custom_call.1} parent=5 // pred_check
        %p178 = pneg %p177
      $region30: #{tpu_custom_call.1} parent=5 // pred_check_branch
        %180 = sbr.rel (%p178) target = $region32
      $region31: #{tpu_custom_call.1} parent=5 // pred_region
        // Predicated region
        $region33: #{tpu_custom_call.1} parent=31 // pred_check
          %p181 = pneg %p34
        $region34: #{tpu_custom_call.1} parent=31 // pred_check_branch
          %183 = sbr.rel (%p181) target = $region36
        $region35: #{tpu_custom_call.1} parent=31 // pred_region
          %p184 = scmp.lt.s32.totalorder %s14, 1
          %s185 = scalar_select %p184, %s14, 1
          %s186 = smul.addr %s185, 2
          %s187 = smul.addr %s186, 8
          %s188 = scalar_lea.vmem %s0, %s187
        $region36: #{tpu_custom_call.1} parent=31 // pred_fallthru
          _
      $region32: #{tpu_custom_call.1} parent=5 // pred_fallthru
        _
      %p189 = scmp.le.s32.totalorder 1, %s14
      %p190 = scmp.lt.s32.totalorder %s14, 3
      %p191 = pnand %p189, %p190
      %p192 = pneg %p191
      // Predicated region
      $region37: #{tpu_custom_call.1} parent=5 // pred_check
        _
      $region38: #{tpu_custom_call.1} parent=5 // pred_check_branch
        %194 = sbr.rel (%p191) target = $region40
      $region39: #{tpu_custom_call.1} parent=5 // pred_region
        %s195 = ssub.s32 %s14, 1
        %p196 = scmp.lt.s32.totalorder %s19, 1
        %s197 = scalar_select %p196, %s19, 1
        %s198 = smul.addr %s197, 2
        %s199 = smul.addr %s198, 8
        %s200 = scalar_lea.vmem %s0, %s199
        %p201 = pneg %p40
        %p202 = pneg %p37
        %p203 = pneg %p61
        %p204 = pneg %p58
        %p205 = pneg %p82
        %p206 = pneg %p79
        %p207 = pneg %p103
        %p208 = pneg %p100
        %p209 = pneg %p124
        %p210 = pneg %p121
        %p211 = pneg %p150
        %p212 = pneg %p147
        %s213 = sand.u32 %s137, 1
        %s214 = scalar_lea.sflag [#allocation3], %s213
        %s215 = sand.u32 %s137, 1
        %s216 = smul.addr %s215, 32
        %s217 = scalar_lea.vmem [#allocation2], %s216
        %p218 = scmp.lt.s32.totalorder %s19, 1
        %s219 = scalar_select %p218, %s19, 1
        %s220 = smul.addr %s219, 2
        %s221 = smul.addr %s220, 8
        %s222 = scalar_lea.vmem %s0, %s221
        %v224 = vld [vmem:[%s222] sm:$0xff]
        %v225 = vld [vmem:[%s222 + $0x8] sm:$0xff]
        %v226 = vld [vmem:[%s1] sm:$0xff]
        %v227 = vld [vmem:[%s1 + $0x8] sm:$0xff]
        %v228 = vld [vmem:[%s1 + $0x10] sm:$0xff]
        %v229 = vld [vmem:[%s1 + $0x18] sm:$0xff]
        %v230 = vld [vmem:[%s1 + $0x20] sm:$0xff]
        %v231 = vld [vmem:[%s1 + $0x28] sm:$0xff]
        %v232 = vld [vmem:[%s1 + $0x30] sm:$0xff]
        %v233 = vld [vmem:[%s1 + $0x38] sm:$0xff]
        %v234 = vld [vmem:[%s1 + $0x40] sm:$0xff]
        %v235 = vld [vmem:[%s1 + $0x48] sm:$0xff]
        %v236 = vld [vmem:[%s1 + $0x50] sm:$0xff]
        %v237 = vld [vmem:[%s1 + $0x58] sm:$0xff]
        %v238 = vld [vmem:[%s1 + $0x60] sm:$0xff]
        %v239 = vld [vmem:[%s1 + $0x68] sm:$0xff]
        %v240 = vld [vmem:[%s1 + $0x70] sm:$0xff]
        %v241 = vld [vmem:[%s1 + $0x78] sm:$0xff]
        %v242 = vld [vmem:[%s1 + $0x80] sm:$0xff]
        %v243 = vld [vmem:[%s1 + $0x88] sm:$0xff]
        %v244 = vld [vmem:[%s1 + $0x90] sm:$0xff]
        %v245 = vld [vmem:[%s1 + $0x98] sm:$0xff]
        %v246 = vld [vmem:[%s1 + $0xa0] sm:$0xff]
        %v247 = vld [vmem:[%s1 + $0xa8] sm:$0xff]
        %v248 = vld [vmem:[%s1 + $0xb0] sm:$0xff]
        %v249 = vld [vmem:[%s1 + $0xb8] sm:$0xff]
        %v250 = vld [vmem:[%s2] sm:$0xff]
        %v251 = vld [vmem:[%s2 + $0x8] sm:$0xff]
        %v252 = vld [vmem:[%s2 + $0x10] sm:$0xff]
        %v253 = vld [vmem:[%s2 + $0x18] sm:$0xff]
        %v254 = vld [vmem:[%s2 + $0x20] sm:$0xff]
        %v255 = vld [vmem:[%s2 + $0x28] sm:$0xff]
        %v256 = vld [vmem:[%s2 + $0x30] sm:$0xff]
        %v257 = vld [vmem:[%s2 + $0x38] sm:$0xff]
        %v258 = vld [vmem:[%s2 + $0x40] sm:$0xff]
        %v259 = vld [vmem:[%s2 + $0x48] sm:$0xff]
        %v260 = vld [vmem:[%s2 + $0x50] sm:$0xff]
        %v261 = vld [vmem:[%s2 + $0x58] sm:$0xff]
        %v262 = vld [vmem:[%s2 + $0x60] sm:$0xff]
        %v263 = vld [vmem:[%s2 + $0x68] sm:$0xff]
        %v264 = vld [vmem:[%s2 + $0x70] sm:$0xff]
        %v265 = vld [vmem:[%s2 + $0x78] sm:$0xff]
        %v266 = vld [vmem:[%s2 + $0x80] sm:$0xff]
        %v267 = vld [vmem:[%s2 + $0x88] sm:$0xff]
        %v268 = vld [vmem:[%s2 + $0x90] sm:$0xff]
        %v269 = vld [vmem:[%s2 + $0x98] sm:$0xff]
        %v270 = vld [vmem:[%s2 + $0xa0] sm:$0xff]
        %v271 = vld [vmem:[%s2 + $0xa8] sm:$0xff]
        %v272 = vld [vmem:[%s2 + $0xb0] sm:$0xff]
        %v273 = vld [vmem:[%s2 + $0xb8] sm:$0xff]
        %275 = vset.pattern.permute.xlu0 0
        %276 = vperm.xlu0 %275, %v250
        %v277 = vpop.permute.xlu0 %276
        %280 = vset.pattern.permute.xlu0 0
        %281 = vperm.xlu0 %280, %v251
        %v282 = vpop.permute.xlu0 %281
        %285 = vset.pattern.permute.xlu0 0
        %286 = vperm.xlu0 %285, %v252
        %v287 = vpop.permute.xlu0 %286
        %290 = vset.pattern.permute.xlu0 0
        %291 = vperm.xlu0 %290, %v253
        %v292 = vpop.permute.xlu0 %291
        %295 = vset.pattern.permute.xlu0 0
        %296 = vperm.xlu0 %295, %v254
        %v297 = vpop.permute.xlu0 %296
        %300 = vset.pattern.permute.xlu0 0
        %301 = vperm.xlu0 %300, %v255
        %v302 = vpop.permute.xlu0 %301
        %305 = vset.pattern.permute.xlu0 0
        %306 = vperm.xlu0 %305, %v256
        %v307 = vpop.permute.xlu0 %306
        %310 = vset.pattern.permute.xlu0 0
        %311 = vperm.xlu0 %310, %v257
        %v312 = vpop.permute.xlu0 %311
        %315 = vset.pattern.permute.xlu0 0
        %316 = vperm.xlu0 %315, %v258
        %v317 = vpop.permute.xlu0 %316
        %320 = vset.pattern.permute.xlu0 0
        %321 = vperm.xlu0 %320, %v259
        %v322 = vpop.permute.xlu0 %321
        %325 = vset.pattern.permute.xlu0 0
        %326 = vperm.xlu0 %325, %v260
        %v327 = vpop.permute.xlu0 %326
        %330 = vset.pattern.permute.xlu0 0
        %331 = vperm.xlu0 %330, %v261
        %v332 = vpop.permute.xlu0 %331
        %335 = vset.pattern.permute.xlu0 0
        %336 = vperm.xlu0 %335, %v262
        %v337 = vpop.permute.xlu0 %336
        %340 = vset.pattern.permute.xlu0 0
        %341 = vperm.xlu0 %340, %v263
        %v342 = vpop.permute.xlu0 %341
        %345 = vset.pattern.permute.xlu0 0
        %346 = vperm.xlu0 %345, %v264
        %v347 = vpop.permute.xlu0 %346
        %350 = vset.pattern.permute.xlu0 0
        %351 = vperm.xlu0 %350, %v265
        %v352 = vpop.permute.xlu0 %351
        %355 = vset.pattern.permute.xlu0 0
        %356 = vperm.xlu0 %355, %v266
        %v357 = vpop.permute.xlu0 %356
        %360 = vset.pattern.permute.xlu0 0
        %361 = vperm.xlu0 %360, %v267
        %v362 = vpop.permute.xlu0 %361
        %365 = vset.pattern.permute.xlu0 0
        %366 = vperm.xlu0 %365, %v268
        %v367 = vpop.permute.xlu0 %366
        %370 = vset.pattern.permute.xlu0 0
        %371 = vperm.xlu0 %370, %v269
        %v372 = vpop.permute.xlu0 %371
        %375 = vset.pattern.permute.xlu0 0
        %376 = vperm.xlu0 %375, %v270
        %v377 = vpop.permute.xlu0 %376
        %380 = vset.pattern.permute.xlu0 0
        %381 = vperm.xlu0 %380, %v271
        %v382 = vpop.permute.xlu0 %381
        %385 = vset.pattern.permute.xlu0 0
        %386 = vperm.xlu0 %385, %v272
        %v387 = vpop.permute.xlu0 %386
        %390 = vset.pattern.permute.xlu0 0
        %391 = vperm.xlu0 %390, %v273
        %v392 = vpop.permute.xlu0 %391
        %vm394 = vcmask 130048
        %v396 = vsel %vm394, %v226, 0
        %v399 = vsel %vm394, %v227, 0
        %v402 = vsel %vm394, %v228, 0
        %v405 = vsel %vm394, %v229, 0
        %v408 = vsel %vm394, %v230, 0
        %v411 = vsel %vm394, %v231, 0
        %v414 = vsel %vm394, %v232, 0
        %v417 = vsel %vm394, %v233, 0
        %v420 = vsel %vm394, %v234, 0
        %v423 = vsel %vm394, %v235, 0
        %v426 = vsel %vm394, %v236, 0
        %v429 = vsel %vm394, %v237, 0
        %v432 = vsel %vm394, %v238, 0
        %v435 = vsel %vm394, %v239, 0
        %v438 = vsel %vm394, %v240, 0
        %v441 = vsel %vm394, %v241, 0
        %v444 = vsel %vm394, %v242, 0
        %v447 = vsel %vm394, %v243, 0
        %v450 = vsel %vm394, %v244, 0
        %v453 = vsel %vm394, %v245, 0
        %v456 = vsel %vm394, %v246, 0
        %v459 = vsel %vm394, %v247, 0
        %v462 = vsel %vm394, %v248, 0
        %v465 = vsel %vm394, %v249, 0
        %467 = vmatprep.subr.mxu0 0.0
        %468 = vmatpush1.msra.mxu0 0.0
        %469 = vmatprep.subr.mxu0 0.0
        %470 = vmatpush1.msra.mxu0 0.0
        %471 = vmatprep.subr.mxu0 0.0
        %472 = vmatpush1.msra.mxu0 0.0
        %473 = vmatprep.subr.mxu0 0.0
        %474 = vmatpush1.msra.mxu0 0.0
        %475 = vmatprep.subr.mxu0 0.0
        %476 = vmatpush1.msra.mxu0 0.0
        %477 = vmatprep.subr.mxu0 0.0
        %478 = vmatpush1.msra.mxu0 0.0
        %479 = vmatprep.subr.mxu0 0.0
        %480 = vmatpush1.msra.mxu0 0.0
        %481 = vmatprep.subr.mxu0 0.0
        %482 = vmatpush1.msra.mxu0 0.0
        %483 = vmatprep.subr.mxu0 0.0
        %484 = vmatpush1.msra.mxu0 0.0
        %485 = vmatprep.subr.mxu0 0.0
        %486 = vmatpush1.msra.mxu0 0.0
        %487 = vmatprep.subr.mxu0 0.0
        %488 = vmatpush1.msra.mxu0 0.0
        %489 = vmatprep.subr.mxu0 0.0
        %490 = vmatpush1.msra.mxu0 0.0
        %491 = vmatprep.subr.mxu0 0.0
        %492 = vmatpush1.msra.mxu0 0.0
        %493 = vmatprep.subr.mxu0 0.0
        %494 = vmatpush1.msra.mxu0 0.0
        %495 = vmatprep.subr.mxu0 0.0
        %496 = vmatpush1.msra.mxu0 %v225
        %497 = vmatprep.subr.mxu0 0.0
        %498 = vmatpush1.msra.mxu0 %v224
        %499 = vmatprep.subr.mxu0 0.0
        %500 = vmatpush2.msra.mxu0 0.0
        %501 = vmatprep.subr.mxu0 0.0
        %502 = vmatpush2.msra.mxu0 0.0
        %503 = vmatprep.subr.mxu0 0.0
        %504 = vmatpush2.msra.mxu0 0.0
        %505 = vmatprep.subr.mxu0 0.0
        %506 = vmatpush2.msra.mxu0 0.0
        %507 = vmatprep.subr.mxu0 0.0
        %508 = vmatpush2.msra.mxu0 0.0
        %509 = vmatprep.subr.mxu0 0.0
        %510 = vmatpush2.msra.mxu0 0.0
        %511 = vmatprep.subr.mxu0 0.0
        %512 = vmatpush2.msra.mxu0 0.0
        %513 = vmatprep.subr.mxu0 0.0
        %514 = vmatpush2.msra.mxu0 0.0
        %515 = vmatprep.subr.mxu0 0.0
        %516 = vmatpush2.msra.mxu0 0.0
        %517 = vmatprep.subr.mxu0 0.0
        %518 = vmatpush2.msra.mxu0 0.0
        %519 = vmatprep.subr.mxu0 0.0
        %520 = vmatpush2.msra.mxu0 0.0
        %521 = vmatprep.subr.mxu0 0.0
        %522 = vmatpush2.msra.mxu0 0.0
        %523 = vmatprep.subr.mxu0 0.0
        %524 = vmatpush2.msra.mxu0 0.0
        %525 = vmatprep.subr.mxu0 0.0
        %526 = vmatpush2.msra.mxu0 0.0
        %527 = vmatprep.subr.mxu0 0.0
        %528 = vmatpush2.msra.mxu0 0.0
        %529 = vmatprep.subr.mxu0 0.0
        %530 = vmatpush2.msra.mxu0 0.0
        %531 = vmatprep.mubr.f32.mxu0 0.0
        %532 = vmatmul.mubr.f32.gmra.mxu0 %v396
        %v533 = vpop.f32.mrf.mxu0
        %v534 = vadd.f32 %v277, %v533
        %v535 = vpop.f32.mrf.mxu0
        %536 = vmatprep.mubr.f32.mxu0 0.0
        %537 = vmatmul.mubr.f32.gmra.mxu0 %v399
        %v538 = vpop.f32.mrf.mxu0
        %v539 = vadd.f32 %v282, %v538
        %v540 = vpop.f32.mrf.mxu0
        %541 = vmatprep.mubr.f32.mxu0 0.0
        %542 = vmatmul.mubr.f32.gmra.mxu0 %v402
        %v543 = vpop.f32.mrf.mxu0
        %v544 = vadd.f32 %v287, %v543
        %v545 = vpop.f32.mrf.mxu0
        %546 = vmatprep.mubr.f32.mxu0 0.0
        %547 = vmatmul.mubr.f32.gmra.mxu0 %v405
        %v548 = vpop.f32.mrf.mxu0
        %v549 = vadd.f32 %v292, %v548
        %v550 = vpop.f32.mrf.mxu0
        %551 = vmatprep.mubr.f32.mxu0 0.0
        %552 = vmatmul.mubr.f32.gmra.mxu0 %v408
        %v553 = vpop.f32.mrf.mxu0
        %v554 = vadd.f32 %v297, %v553
        %v555 = vpop.f32.mrf.mxu0
        %556 = vmatprep.mubr.f32.mxu0 0.0
        %557 = vmatmul.mubr.f32.gmra.mxu0 %v411
        %v558 = vpop.f32.mrf.mxu0
        %v559 = vadd.f32 %v302, %v558
        %v560 = vpop.f32.mrf.mxu0
        %561 = vmatprep.mubr.f32.mxu0 0.0
        %562 = vmatmul.mubr.f32.gmra.mxu0 %v414
        %v563 = vpop.f32.mrf.mxu0
        %v564 = vadd.f32 %v307, %v563
        %v565 = vpop.f32.mrf.mxu0
        %566 = vmatprep.mubr.f32.mxu0 0.0
        %567 = vmatmul.mubr.f32.gmra.mxu0 %v417
        %v568 = vpop.f32.mrf.mxu0
        %v569 = vadd.f32 %v312, %v568
        %v570 = vpop.f32.mrf.mxu0
        %571 = vmatprep.mubr.f32.mxu0 0.0
        %572 = vmatmul.mubr.f32.gmra.mxu0 %v420
        %v573 = vpop.f32.mrf.mxu0
        %v574 = vadd.f32 %v317, %v573
        %v575 = vpop.f32.mrf.mxu0
        %576 = vmatprep.mubr.f32.mxu0 0.0
        %577 = vmatmul.mubr.f32.gmra.mxu0 %v423
        %v578 = vpop.f32.mrf.mxu0
        %v579 = vadd.f32 %v322, %v578
        %v580 = vpop.f32.mrf.mxu0
        %581 = vmatprep.mubr.f32.mxu0 0.0
        %582 = vmatmul.mubr.f32.gmra.mxu0 %v426
        %v583 = vpop.f32.mrf.mxu0
        %v584 = vadd.f32 %v327, %v583
        %v585 = vpop.f32.mrf.mxu0
        %586 = vmatprep.mubr.f32.mxu0 0.0
        %587 = vmatmul.mubr.f32.gmra.mxu0 %v429
        %v588 = vpop.f32.mrf.mxu0
        %v589 = vadd.f32 %v332, %v588
        %v590 = vpop.f32.mrf.mxu0
        %591 = vmatprep.mubr.f32.mxu0 0.0
        %592 = vmatmul.mubr.f32.gmra.mxu0 %v432
        %v593 = vpop.f32.mrf.mxu0
        %v594 = vadd.f32 %v337, %v593
        %v595 = vpop.f32.mrf.mxu0
        %596 = vmatprep.mubr.f32.mxu0 0.0
        %597 = vmatmul.mubr.f32.gmra.mxu0 %v435
        %v598 = vpop.f32.mrf.mxu0
        %v599 = vadd.f32 %v342, %v598
        %v600 = vpop.f32.mrf.mxu0
        %601 = vmatprep.mubr.f32.mxu0 0.0
        %602 = vmatmul.mubr.f32.gmra.mxu0 %v438
        %v603 = vpop.f32.mrf.mxu0
        %v604 = vadd.f32 %v347, %v603
        %v605 = vpop.f32.mrf.mxu0
        %606 = vmatprep.mubr.f32.mxu0 0.0
        %607 = vmatmul.mubr.f32.gmra.mxu0 %v441
        %v608 = vpop.f32.mrf.mxu0
        %v609 = vadd.f32 %v352, %v608
        %v610 = vpop.f32.mrf.mxu0
        %611 = vmatprep.mubr.f32.mxu0 0.0
        %612 = vmatmul.mubr.f32.gmra.mxu0 %v444
        %v613 = vpop.f32.mrf.mxu0
        %v614 = vadd.f32 %v357, %v613
        %v615 = vpop.f32.mrf.mxu0
        %616 = vmatprep.mubr.f32.mxu0 0.0
        %617 = vmatmul.mubr.f32.gmra.mxu0 %v447
        %v618 = vpop.f32.mrf.mxu0
        %v619 = vadd.f32 %v362, %v618
        %v620 = vpop.f32.mrf.mxu0
        %621 = vmatprep.mubr.f32.mxu0 0.0
        %622 = vmatmul.mubr.f32.gmra.mxu0 %v450
        %v623 = vpop.f32.mrf.mxu0
        %v624 = vadd.f32 %v367, %v623
        %v625 = vpop.f32.mrf.mxu0
        %626 = vmatprep.mubr.f32.mxu0 0.0
        %627 = vmatmul.mubr.f32.gmra.mxu0 %v453
        %v628 = vpop.f32.mrf.mxu0
        %v629 = vadd.f32 %v372, %v628
        %v630 = vpop.f32.mrf.mxu0
        %631 = vmatprep.mubr.f32.mxu0 0.0
        %632 = vmatmul.mubr.f32.gmra.mxu0 %v456
        %v633 = vpop.f32.mrf.mxu0
        %v634 = vadd.f32 %v377, %v633
        %v635 = vpop.f32.mrf.mxu0
        %636 = vmatprep.mubr.f32.mxu0 0.0
        %637 = vmatmul.mubr.f32.gmra.mxu0 %v459
        %v638 = vpop.f32.mrf.mxu0
        %v639 = vadd.f32 %v382, %v638
        %v640 = vpop.f32.mrf.mxu0
        %641 = vmatprep.mubr.f32.mxu0 0.0
        %642 = vmatmul.mubr.f32.gmra.mxu0 %v462
        %v643 = vpop.f32.mrf.mxu0
        %v644 = vadd.f32 %v387, %v643
        %v645 = vpop.f32.mrf.mxu0
        %646 = vmatprep.mubr.f32.mxu0 0.0
        %647 = vmatmul.mubr.f32.gmra.mxu0 %v465
        %v648 = vpop.f32.mrf.mxu0
        %v649 = vadd.f32 %v392, %v648
        %v650 = vpop.f32.mrf.mxu0
        %651 = vdwg.mxu0
        %652 = vxpose.xlu0.b32.start [1/16] %v534, 128
        %653 = vxpose.xlu0.b32.cont [2/16] %v539, 128
        %654 = vxpose.xlu0.b32.cont [3/16] %v544, 128
        %655 = vxpose.xlu0.b32.cont [4/16] %v549, 128
        %656 = vxpose.xlu0.b32.cont [5/16] %v554, 128
        %657 = vxpose.xlu0.b32.cont [6/16] %v559, 128
        %658 = vxpose.xlu0.b32.cont [7/16] %v564, 128
        %659 = vxpose.xlu0.b32.cont [8/16] %v569, 128
        %660 = vxpose.xlu0.b32.cont [9/16] 0.0, 128
        %661 = vxpose.xlu0.b32.cont [10/16] 0.0, 128
        %662 = vxpose.xlu0.b32.cont [11/16] 0.0, 128
        %663 = vxpose.xlu0.b32.cont [12/16] 0.0, 128
        %664 = vxpose.xlu0.b32.cont [13/16] 0.0, 128
        %665 = vxpose.xlu0.b32.cont [14/16] 0.0, 128
        %666 = vxpose.xlu0.b32.cont [15/16] 0.0, 128
        %667 = vxpose.xlu0.b32.end [16/16] 0.0, 128
        %v668 = vpop.trf.xlu0
        %v669 = vpop.trf.xlu0
        %v670 = vpop.trf.xlu0
        %v671 = vpop.trf.xlu0
        %v672 = vpop.trf.xlu0
        %v673 = vpop.trf.xlu0
        %v674 = vpop.trf.xlu0
        %v675 = vpop.trf.xlu0
        %v676 = vpop.trf.xlu0
        %v677 = vpop.trf.xlu0
        %v678 = vpop.trf.xlu0
        %v679 = vpop.trf.xlu0
        %v680 = vpop.trf.xlu0
        %v681 = vpop.trf.xlu0
        %v682 = vpop.trf.xlu0
        %v683 = vpop.trf.xlu0
        %v684 = vpack.c.bf16 %v669, %v668
        %v685 = vpack.c.bf16 %v671, %v670
        %v686 = vpack.c.bf16 %v673, %v672
        %v687 = vpack.c.bf16 %v675, %v674
        %v688 = vpack.c.bf16 %v677, %v676
        %v689 = vpack.c.bf16 %v679, %v678
        %v690 = vpack.c.bf16 %v681, %v680
        %v691 = vpack.c.bf16 %v683, %v682
        %v692 = vpack.c.bf16 %v579, %v574
        %v693 = vpack.c.bf16 %v589, %v584
        %v694 = vpack.c.bf16 %v599, %v594
        %v695 = vpack.c.bf16 %v609, %v604
        %vm696 = vcmask 523264
        %v698 = vsel %vm696, %v684, 0
        %v701 = vsel %vm696, %v685, 0
        %v704 = vsel %vm696, %v686, 0
        %v707 = vsel %vm696, %v687, 0
        %v710 = vsel %vm696, %v688, 0
        %v713 = vsel %vm696, %v689, 0
        %v716 = vsel %vm696, %v690, 0
        %v719 = vsel %vm696, %v691, 0
        %721 = vmatprep.subr.bf16.mxu0 0
        %722 = vmatpush1.bf16.msra.mxu0 0
        %723 = vmatprep.subr.bf16.mxu0 0
        %724 = vmatpush1.bf16.msra.mxu0 0
        %725 = vmatprep.subr.bf16.mxu0 0
        %726 = vmatpush1.bf16.msra.mxu0 0
        %727 = vmatprep.subr.bf16.mxu0 0
        %728 = vmatpush1.bf16.msra.mxu0 0
        %729 = vmatprep.subr.bf16.mxu0 0
        %730 = vmatpush1.bf16.msra.mxu0 %v695
        %731 = vmatprep.subr.bf16.mxu0 0
        %732 = vmatpush1.bf16.msra.mxu0 %v694
        %733 = vmatprep.subr.bf16.mxu0 0
        %734 = vmatpush1.bf16.msra.mxu0 %v693
        %735 = vmatprep.subr.bf16.mxu0 0
        %736 = vmatpush1.bf16.msra.mxu0 %v692
        %737 = vmatprep.subr.bf16.mxu0 0
        %738 = vmatpush2.bf16.msra.mxu0 0
        %739 = vmatprep.subr.bf16.mxu0 0
        %740 = vmatpush2.bf16.msra.mxu0 0
        %741 = vmatprep.subr.bf16.mxu0 0
        %742 = vmatpush2.bf16.msra.mxu0 0
        %743 = vmatprep.subr.bf16.mxu0 0
        %744 = vmatpush2.bf16.msra.mxu0 0
        %745 = vmatprep.subr.bf16.mxu0 0
        %746 = vmatpush2.bf16.msra.mxu0 0
        %747 = vmatprep.subr.bf16.mxu0 0
        %748 = vmatpush2.bf16.msra.mxu0 0
        %749 = vmatprep.subr.bf16.mxu0 0
        %750 = vmatpush2.bf16.msra.mxu0 0
        %751 = vmatprep.subr.bf16.mxu0 0
        %752 = vmatpush2.bf16.msra.mxu0 0
        %753 = vmatprep.mubr.bf16.mxu0 0
        %754 = vmatmul.mubr.bf16.gmra.mxu0 %v698
        %v755 = vpop.f32.mrf.mxu0
        %v756 = vadd.f32 0.0, %v755
        %v757 = vpop.f32.mrf.mxu0
        %v758 = vpop.f32.mrf.mxu0
        %v759 = vadd.f32 0.0, %v758
        %v760 = vpop.f32.mrf.mxu0
        %761 = vmatprep.mubr.bf16.mxu0 0
        %762 = vmatmul.mubr.bf16.gmra.mxu0 %v701
        %v763 = vpop.f32.mrf.mxu0
        %v764 = vadd.f32 0.0, %v763
        %v765 = vpop.f32.mrf.mxu0
        %v766 = vpop.f32.mrf.mxu0
        %v767 = vadd.f32 0.0, %v766
        %v768 = vpop.f32.mrf.mxu0
        %769 = vmatprep.mubr.bf16.mxu0 0
        %770 = vmatmul.mubr.bf16.gmra.mxu0 %v704
        %v771 = vpop.f32.mrf.mxu0
        %v772 = vadd.f32 0.0, %v771
        %v773 = vpop.f32.mrf.mxu0
        %v774 = vpop.f32.mrf.mxu0
        %v775 = vadd.f32 0.0, %v774
        %v776 = vpop.f32.mrf.mxu0
        %777 = vmatprep.mubr.bf16.mxu0 0
        %778 = vmatmul.mubr.bf16.gmra.mxu0 %v707
        %v779 = vpop.f32.mrf.mxu0
        %v780 = vadd.f32 0.0, %v779
        %v781 = vpop.f32.mrf.mxu0
        %v782 = vpop.f32.mrf.mxu0
        %v783 = vadd.f32 0.0, %v782
        %v784 = vpop.f32.mrf.mxu0
        %785 = vmatprep.mubr.bf16.mxu0 0
        %786 = vmatmul.mubr.bf16.gmra.mxu0 %v710
        %v787 = vpop.f32.mrf.mxu0
        %v788 = vadd.f32 0.0, %v787
        %v789 = vpop.f32.mrf.mxu0
        %v790 = vpop.f32.mrf.mxu0
        %v791 = vadd.f32 0.0, %v790
        %v792 = vpop.f32.mrf.mxu0
        %793 = vmatprep.mubr.bf16.mxu0 0
        %794 = vmatmul.mubr.bf16.gmra.mxu0 %v713
        %v795 = vpop.f32.mrf.mxu0
        %v796 = vadd.f32 0.0, %v795
        %v797 = vpop.f32.mrf.mxu0
        %v798 = vpop.f32.mrf.mxu0
        %v799 = vadd.f32 0.0, %v798
        %v800 = vpop.f32.mrf.mxu0
        %801 = vmatprep.mubr.bf16.mxu0 0
        %802 = vmatmul.mubr.bf16.gmra.mxu0 %v716
        %v803 = vpop.f32.mrf.mxu0
        %v804 = vadd.f32 0.0, %v803
        %v805 = vpop.f32.mrf.mxu0
        %v806 = vpop.f32.mrf.mxu0
        %v807 = vadd.f32 0.0, %v806
        %v808 = vpop.f32.mrf.mxu0
        %809 = vmatprep.mubr.bf16.mxu0 0
        %810 = vmatmul.mubr.bf16.gmra.mxu0 %v719
        %v811 = vpop.f32.mrf.mxu0
        %v812 = vadd.f32 0.0, %v811
        %v813 = vpop.f32.mrf.mxu0
        %v814 = vpop.f32.mrf.mxu0
        %v815 = vadd.f32 0.0, %v814
        %v816 = vpop.f32.mrf.mxu0
        %817 = vdwg.mxu0
        %818 = vmax.xlane.f32.xlu0 %v756
        %v819 = vpop.xlane.xlu0 %818
        %820 = vmax.xlane.f32.xlu0 %v759
        %v821 = vpop.xlane.xlu0 %820
        %822 = vmax.xlane.f32.xlu0 %v764
        %v823 = vpop.xlane.xlu0 %822
        %824 = vmax.xlane.f32.xlu0 %v767
        %v825 = vpop.xlane.xlu0 %824
        %826 = vmax.xlane.f32.xlu0 %v772
        %v827 = vpop.xlane.xlu0 %826
        %828 = vmax.xlane.f32.xlu0 %v775
        %v829 = vpop.xlane.xlu0 %828
        %830 = vmax.xlane.f32.xlu0 %v780
        %v831 = vpop.xlane.xlu0 %830
        %832 = vmax.xlane.f32.xlu0 %v783
        %v833 = vpop.xlane.xlu0 %832
        %834 = vmax.xlane.f32.xlu0 %v788
        %v835 = vpop.xlane.xlu0 %834
        %836 = vmax.xlane.f32.xlu0 %v791
        %v837 = vpop.xlane.xlu0 %836
        %838 = vmax.xlane.f32.xlu0 %v796
        %v839 = vpop.xlane.xlu0 %838
        %840 = vmax.xlane.f32.xlu0 %v799
        %v841 = vpop.xlane.xlu0 %840
        %842 = vmax.xlane.f32.xlu0 %v804
        %v843 = vpop.xlane.xlu0 %842
        %844 = vmax.xlane.f32.xlu0 %v807
        %v845 = vpop.xlane.xlu0 %844
        %846 = vmax.xlane.f32.xlu0 %v812
        %v847 = vpop.xlane.xlu0 %846
        %848 = vmax.xlane.f32.xlu0 %v815
        %v849 = vpop.xlane.xlu0 %848
        %v850 = vsub.f32 %v756, %v819
        %v851 = vsub.f32 %v759, %v821
        %v852 = vsub.f32 %v764, %v823
        %v853 = vsub.f32 %v767, %v825
        %v854 = vsub.f32 %v772, %v827
        %v855 = vsub.f32 %v775, %v829
        %v856 = vsub.f32 %v780, %v831
        %v857 = vsub.f32 %v783, %v833
        %v858 = vsub.f32 %v788, %v835
        %v859 = vsub.f32 %v791, %v837
        %v860 = vsub.f32 %v796, %v839
        %v861 = vsub.f32 %v799, %v841
        %v862 = vsub.f32 %v804, %v843
        %v863 = vsub.f32 %v807, %v845
        %v864 = vsub.f32 %v812, %v847
        %v865 = vsub.f32 %v815, %v849
        %v866 = vmul.f32 %v850, 1.442695
        %v867 = vpow.pop %v866
        %v868 = vmul.f32 %v851, 1.442695
        %v869 = vpow.pop %v868
        %v870 = vmul.f32 %v852, 1.442695
        %v871 = vpow.pop %v870
        %v872 = vmul.f32 %v853, 1.442695
        %v873 = vpow.pop %v872
        %v874 = vmul.f32 %v854, 1.442695
        %v875 = vpow.pop %v874
        %v876 = vmul.f32 %v855, 1.442695
        %v877 = vpow.pop %v876
        %v878 = vmul.f32 %v856, 1.442695
        %v879 = vpow.pop %v878
        %v880 = vmul.f32 %v857, 1.442695
        %v881 = vpow.pop %v880
        %v882 = vmul.f32 %v858, 1.442695
        %v883 = vpow.pop %v882
        %v884 = vmul.f32 %v859, 1.442695
        %v885 = vpow.pop %v884
        %v886 = vmul.f32 %v860, 1.442695
        %v887 = vpow.pop %v886
        %v888 = vmul.f32 %v861, 1.442695
        %v889 = vpow.pop %v888
        %v890 = vmul.f32 %v862, 1.442695
        %v891 = vpow.pop %v890
        %v892 = vmul.f32 %v863, 1.442695
        %v893 = vpow.pop %v892
        %v894 = vmul.f32 %v864, 1.442695
        %v895 = vpow.pop %v894
        %v896 = vmul.f32 %v865, 1.442695
        %v897 = vpow.pop %v896
        %898 = vadd.xlane.f32.xlu0 %v867
        %v899 = vpop.xlane.xlu0 %898
        %900 = vadd.xlane.f32.xlu0 %v869
        %v901 = vpop.xlane.xlu0 %900
        %902 = vadd.xlane.f32.xlu0 %v871
        %v903 = vpop.xlane.xlu0 %902
        %904 = vadd.xlane.f32.xlu0 %v873
        %v905 = vpop.xlane.xlu0 %904
        %906 = vadd.xlane.f32.xlu0 %v875
        %v907 = vpop.xlane.xlu0 %906
        %908 = vadd.xlane.f32.xlu0 %v877
        %v909 = vpop.xlane.xlu0 %908
        %910 = vadd.xlane.f32.xlu0 %v879
        %v911 = vpop.xlane.xlu0 %910
        %912 = vadd.xlane.f32.xlu0 %v881
        %v913 = vpop.xlane.xlu0 %912
        %914 = vadd.xlane.f32.xlu0 %v883
        %v915 = vpop.xlane.xlu0 %914
        %916 = vadd.xlane.f32.xlu0 %v885
        %v917 = vpop.xlane.xlu0 %916
        %918 = vadd.xlane.f32.xlu0 %v887
        %v919 = vpop.xlane.xlu0 %918
        %920 = vadd.xlane.f32.xlu0 %v889
        %v921 = vpop.xlane.xlu0 %920
        %922 = vadd.xlane.f32.xlu0 %v891
        %v923 = vpop.xlane.xlu0 %922
        %924 = vadd.xlane.f32.xlu0 %v893
        %v925 = vpop.xlane.xlu0 %924
        %926 = vadd.xlane.f32.xlu0 %v895
        %v927 = vpop.xlane.xlu0 %926
        %928 = vadd.xlane.f32.xlu0 %v897
        %v929 = vpop.xlane.xlu0 %928
        %v930 = vrcp.pop %v899
        %v931 = vrcp.pop %v901
        %v932 = vrcp.pop %v903
        %v933 = vrcp.pop %v905
        %v934 = vrcp.pop %v907
        %v935 = vrcp.pop %v909
        %v936 = vrcp.pop %v911
        %v937 = vrcp.pop %v913
        %v938 = vrcp.pop %v915
        %v939 = vrcp.pop %v917
        %v940 = vrcp.pop %v919
        %v941 = vrcp.pop %v921
        %v942 = vrcp.pop %v923
        %v943 = vrcp.pop %v925
        %v944 = vrcp.pop %v927
        %v945 = vrcp.pop %v929
        %v946 = vmul.f32 %v867, %v930
        %v947 = vmul.f32 %v869, %v931
        %v948 = vmul.f32 %v871, %v932
        %v949 = vmul.f32 %v873, %v933
        %v950 = vmul.f32 %v875, %v934
        %v951 = vmul.f32 %v877, %v935
        %v952 = vmul.f32 %v879, %v936
        %v953 = vmul.f32 %v881, %v937
        %v954 = vmul.f32 %v883, %v938
        %v955 = vmul.f32 %v885, %v939
        %v956 = vmul.f32 %v887, %v940
        %v957 = vmul.f32 %v889, %v941
        %v958 = vmul.f32 %v891, %v942
        %v959 = vmul.f32 %v893, %v943
        %v960 = vmul.f32 %v895, %v944
        %v961 = vmul.f32 %v897, %v945
        %v962 = vpack.c.bf16 %v619, %v614
        %v963 = vpack.c.bf16 %v629, %v624
        %v964 = vpack.c.bf16 %v639, %v634
        %v965 = vpack.c.bf16 %v649, %v644
        %v966 = vpack.c.bf16 %v947, %v946
        %v967 = vpack.c.bf16 %v949, %v948
        %v968 = vpack.c.bf16 %v951, %v950
        %v969 = vpack.c.bf16 %v953, %v952
        %v970 = vpack.c.bf16 %v955, %v954
        %v971 = vpack.c.bf16 %v957, %v956
        %v972 = vpack.c.bf16 %v959, %v958
        %v973 = vpack.c.bf16 %v961, %v960
        %974 = vmatprep.subr.bf16.mxu0 0
        %975 = vmatpush1.bf16.xpose.msra.mxu0 %v973
        %976 = vmatprep.subr.bf16.mxu0 0
        %977 = vmatpush1.bf16.xpose.msra.mxu0 %v972
        %978 = vmatprep.subr.bf16.mxu0 0
        %979 = vmatpush1.bf16.xpose.msra.mxu0 %v971
        %980 = vmatprep.subr.bf16.mxu0 0
        %981 = vmatpush1.bf16.xpose.msra.mxu0 %v970
        %982 = vmatprep.subr.bf16.mxu0 0
        %983 = vmatpush1.bf16.xpose.msra.mxu0 %v969
        %984 = vmatprep.subr.bf16.mxu0 0
        %985 = vmatpush1.bf16.xpose.msra.mxu0 %v968
        %986 = vmatprep.subr.bf16.mxu0 0
        %987 = vmatpush1.bf16.xpose.msra.mxu0 %v967
        %988 = vmatprep.subr.bf16.mxu0 0
        %989 = vmatpush1.bf16.xpose.msra.mxu0 %v966
        %990 = vmatprep.subr.bf16.mxu0 0
        %991 = vmatpush2.bf16.xpose.msra.mxu0 0
        %992 = vmatprep.subr.bf16.mxu0 0
        %993 = vmatpush2.bf16.xpose.msra.mxu0 0
        %994 = vmatprep.subr.bf16.mxu0 0
        %995 = vmatpush2.bf16.xpose.msra.mxu0 0
        %996 = vmatprep.subr.bf16.mxu0 0
        %997 = vmatpush2.bf16.xpose.msra.mxu0 0
        %998 = vmatprep.subr.bf16.mxu0 0
        %999 = vmatpush2.bf16.xpose.msra.mxu0 0
        %1000 = vmatprep.subr.bf16.mxu0 0
        %1001 = vmatpush2.bf16.xpose.msra.mxu0 0
        %1002 = vmatprep.subr.bf16.mxu0 0
        %1003 = vmatpush2.bf16.xpose.msra.mxu0 0
        %1004 = vmatprep.subr.bf16.mxu0 0
        %1005 = vmatpush2.bf16.xpose.msra.mxu0 0
        %1006 = vmatprep.mubr.bf16.mxu0 0
        %1007 = vmatmul.mubr.bf16.gmra.mxu0 %v962
        %v1008 = vpop.f32.mrf.mxu0
        %v1009 = vadd.f32 0.0, %v1008
        %v1010 = vpop.f32.mrf.mxu0
        %v1011 = vpop.f32.mrf.mxu0
        %v1012 = vadd.f32 0.0, %v1011
        %v1013 = vpop.f32.mrf.mxu0
        %1014 = vmatprep.mubr.bf16.mxu0 0
        %1015 = vmatmul.mubr.bf16.gmra.mxu0 %v963
        %v1016 = vpop.f32.mrf.mxu0
        %v1017 = vadd.f32 0.0, %v1016
        %v1018 = vpop.f32.mrf.mxu0
        %v1019 = vpop.f32.mrf.mxu0
        %v1020 = vadd.f32 0.0, %v1019
        %v1021 = vpop.f32.mrf.mxu0
        %1022 = vmatprep.mubr.bf16.mxu0 0
        %1023 = vmatmul.mubr.bf16.gmra.mxu0 %v964
        %v1024 = vpop.f32.mrf.mxu0
        %v1025 = vadd.f32 0.0, %v1024
        %v1026 = vpop.f32.mrf.mxu0
        %v1027 = vpop.f32.mrf.mxu0
        %v1028 = vadd.f32 0.0, %v1027
        %v1029 = vpop.f32.mrf.mxu0
        %1030 = vmatprep.mubr.bf16.mxu0 0
        %1031 = vmatmul.mubr.bf16.gmra.mxu0 %v965
        %v1032 = vpop.f32.mrf.mxu0
        %v1033 = vadd.f32 0.0, %v1032
        %v1034 = vpop.f32.mrf.mxu0
        %v1035 = vpop.f32.mrf.mxu0
        %v1036 = vadd.f32 0.0, %v1035
        %v1037 = vpop.f32.mrf.mxu0
        %1038 = vdwg.mxu0
        %v1039 = vld [vmem:[%s3] sm:$0xff]
        %v1040 = vld [vmem:[%s3 + $0x8] sm:$0xff]
        %v1041 = vld [vmem:[%s3 + $0x10] sm:$0xff]
        %v1042 = vld [vmem:[%s3 + $0x18] sm:$0xff]
        %v1043 = vld [vmem:[%s4] sm:$0xff]
        %v1044 = vld [vmem:[%s4 + $0x8] sm:$0xff]
        %v1045 = vld [vmem:[%s4 + $0x10] sm:$0xff]
        %v1046 = vld [vmem:[%s4 + $0x18] sm:$0xff]
        %1048 = vset.pattern.permute.xlu0 0
        %1049 = vperm.xlu0 %1048, %v1043
        %v1050 = vpop.permute.xlu0 %1049
        %1053 = vset.pattern.permute.xlu0 0
        %1054 = vperm.xlu0 %1053, %v1044
        %v1055 = vpop.permute.xlu0 %1054
        %1058 = vset.pattern.permute.xlu0 0
        %1059 = vperm.xlu0 %1058, %v1045
        %v1060 = vpop.permute.xlu0 %1059
        %1063 = vset.pattern.permute.xlu0 0
        %1064 = vperm.xlu0 %1063, %v1046
        %v1065 = vpop.permute.xlu0 %1064
        %v1068 = vsel %vm696, %v1039, 0
        %v1071 = vsel %vm696, %v1040, 0
        %v1074 = vsel %vm696, %v1041, 0
        %v1077 = vsel %vm696, %v1042, 0
        %1079 = vmatprep.subr.mxu0 0.0
        %1080 = vmatpush1.msra.mxu0 0.0
        %1081 = vmatprep.subr.mxu0 0.0
        %1082 = vmatpush1.msra.mxu0 0.0
        %1083 = vmatprep.subr.mxu0 0.0
        %1084 = vmatpush1.msra.mxu0 0.0
        %1085 = vmatprep.subr.mxu0 0.0
        %1086 = vmatpush1.msra.mxu0 0.0
        %1087 = vmatprep.subr.mxu0 0.0
        %1088 = vmatpush1.msra.mxu0 0.0
        %1089 = vmatprep.subr.mxu0 0.0
        %1090 = vmatpush1.msra.mxu0 0.0
        %1091 = vmatprep.subr.mxu0 0.0
        %1092 = vmatpush1.msra.mxu0 0.0
        %1093 = vmatprep.subr.mxu0 0.0
        %1094 = vmatpush1.msra.mxu0 0.0
        %1095 = vmatprep.subr.mxu0 0.0
        %1096 = vmatpush1.msra.mxu0 %v1036
        %1097 = vmatprep.subr.mxu0 0.0
        %1098 = vmatpush1.msra.mxu0 %v1033
        %1099 = vmatprep.subr.mxu0 0.0
        %1100 = vmatpush1.msra.mxu0 %v1028
        %1101 = vmatprep.subr.mxu0 0.0
        %1102 = vmatpush1.msra.mxu0 %v1025
        %1103 = vmatprep.subr.mxu0 0.0
        %1104 = vmatpush1.msra.mxu0 %v1020
        %1105 = vmatprep.subr.mxu0 0.0
        %1106 = vmatpush1.msra.mxu0 %v1017
        %1107 = vmatprep.subr.mxu0 0.0
        %1108 = vmatpush1.msra.mxu0 %v1012
        %1109 = vmatprep.subr.mxu0 0.0
        %1110 = vmatpush1.msra.mxu0 %v1009
        %1111 = vmatprep.subr.mxu0 0.0
        %1112 = vmatpush2.msra.mxu0 0.0
        %1113 = vmatprep.subr.mxu0 0.0
        %1114 = vmatpush2.msra.mxu0 0.0
        %1115 = vmatprep.subr.mxu0 0.0
        %1116 = vmatpush2.msra.mxu0 0.0
        %1117 = vmatprep.subr.mxu0 0.0
        %1118 = vmatpush2.msra.mxu0 0.0
        %1119 = vmatprep.subr.mxu0 0.0
        %1120 = vmatpush2.msra.mxu0 0.0
        %1121 = vmatprep.subr.mxu0 0.0
        %1122 = vmatpush2.msra.mxu0 0.0
        %1123 = vmatprep.subr.mxu0 0.0
        %1124 = vmatpush2.msra.mxu0 0.0
        %1125 = vmatprep.subr.mxu0 0.0
        %1126 = vmatpush2.msra.mxu0 0.0
        %1127 = vmatprep.subr.mxu0 0.0
        %1128 = vmatpush2.msra.mxu0 0.0
        %1129 = vmatprep.subr.mxu0 0.0
        %1130 = vmatpush2.msra.mxu0 0.0
        %1131 = vmatprep.subr.mxu0 0.0
        %1132 = vmatpush2.msra.mxu0 0.0
        %1133 = vmatprep.subr.mxu0 0.0
        %1134 = vmatpush2.msra.mxu0 0.0
        %1135 = vmatprep.subr.mxu0 0.0
        %1136 = vmatpush2.msra.mxu0 0.0
        %1137 = vmatprep.subr.mxu0 0.0
        %1138 = vmatpush2.msra.mxu0 0.0
        %1139 = vmatprep.subr.mxu0 0.0
        %1140 = vmatpush2.msra.mxu0 0.0
        %1141 = vmatprep.subr.mxu0 0.0
        %1142 = vmatpush2.msra.mxu0 0.0
        %1143 = vmatprep.mubr.f32.mxu0 0.0
        %1144 = vmatmul.mubr.f32.gmra.mxu0 %v1068
        %v1145 = vpop.f32.mrf.mxu0
        %v1146 = vadd.f32 %v1050, %v1145
        %v1147 = vpop.f32.mrf.mxu0
        %1148 = vmatprep.mubr.f32.mxu0 0.0
        %1149 = vmatmul.mubr.f32.gmra.mxu0 %v1071
        %v1150 = vpop.f32.mrf.mxu0
        %v1151 = vadd.f32 %v1055, %v1150
        %v1152 = vpop.f32.mrf.mxu0
        %1153 = vmatprep.mubr.f32.mxu0 0.0
        %1154 = vmatmul.mubr.f32.gmra.mxu0 %v1074
        %v1155 = vpop.f32.mrf.mxu0
        %v1156 = vadd.f32 %v1060, %v1155
        %v1157 = vpop.f32.mrf.mxu0
        %1158 = vmatprep.mubr.f32.mxu0 0.0
        %1159 = vmatmul.mubr.f32.gmra.mxu0 %v1077
        %v1160 = vpop.f32.mrf.mxu0
        %v1161 = vadd.f32 %v1065, %v1160
        %v1162 = vpop.f32.mrf.mxu0
        %1163 = vdwg.mxu0
        %1164 = vst [vmem:[%s217] sm:$0xff] %v1146
        %1165 = vst [vmem:[%s217 + $0x8] sm:$0xff] %v1151
        %1166 = vst [vmem:[%s217 + $0x10] sm:$0xff] %v1156
        %1167 = vst [vmem:[%s217 + $0x18] sm:$0xff] %v1161
        %s1168 = sand.u32 %s137, 1
        %s1169 = scalar_lea.sflag [#allocation3], %s1168
        %s1170 = sand.u32 %s137, 1
        %s1171 = smul.addr %s1170, 32
        %s1172 = scalar_lea.vmem [#allocation2], %s1171
        // Predicated region
        $region41: #{tpu_custom_call.1} parent=39 // pred_check
          %p1173 = pneg %p147
        $region42: #{tpu_custom_call.1} parent=39 // pred_check_branch
          %1175 = sbr.rel (%p1173) target = $region44
        $region43: #{tpu_custom_call.1} parent=39 // pred_region
          %s1177 = ssub.s32 512, 512
          %1178 = vsyncadd %s1169, %s1177
          %s1179 = smul.addr %s19, 4
          %s1180 = smul.addr %s1179, 128
          %s1181 = scalar_lea.hbm %s5, %s1180
          %s1182 = sshll.u32 %s1172, 4
          %s1183 = int_to_ptr.vmem [resolvable:$true] %s1182
          %1188 = dma.vmem_to_hbm [thread:$0]  %s1183, 512, %s1181, %s1169, 128, 128, 8
        $region44: #{tpu_custom_call.1} parent=39 // pred_fallthru
          _
      $region40: #{tpu_custom_call.1} parent=5 // pred_fallthru
        _
      %p1189 = scmp.le.s32.totalorder 2, %s14
      // Predicated region
      $region45: #{tpu_custom_call.1} parent=5 // pred_check
        %p1190 = pneg %p1189
      $region46: #{tpu_custom_call.1} parent=5 // pred_check_branch
        %1192 = sbr.rel (%p1190) target = $region48
      $region47: #{tpu_custom_call.1} parent=5 // pred_region
        %s1193 = ssub.s32 %s14, 2
        // Predicated region
        $region49: #{tpu_custom_call.1} parent=47 // pred_check
          %p1194 = pneg %p153
        $region50: #{tpu_custom_call.1} parent=47 // pred_check_branch
          %1196 = sbr.rel (%p1194) target = $region52
        $region51: #{tpu_custom_call.1} parent=47 // pred_region
          %s1197 = sand.u32 %s138, 1
          %s1198 = scalar_lea.sflag [#allocation3], %s1197
          %s1199 = sand.u32 %s138, 1
          %s1200 = smul.addr %s1199, 32
          %s1201 = scalar_lea.vmem [#allocation2], %s1200
          %1202 = dma.done %s1198, 512
        $region52: #{tpu_custom_call.1} parent=47 // pred_fallthru
          _
      $region48: #{tpu_custom_call.1} parent=5 // pred_fallthru
        _
    $region6: #{tpu_custom_call.1} parent=1 // loop_footer
      %s18 = sadd.s32 1, %s14
    $region7: #{tpu_custom_call.1} parent=1 // loop_footer_branch
      %13 = sbr.rel target = $region3
    $region8: #{tpu_custom_call.1} parent=1 // loop_exit
      _
    %1203 = vsyncpa [#allocation3], 1
    %s1204 = scalar_lea.sflag [#allocation3], 1
    %1205 = vsyncpa %s1204, 1

</llo_original>
